<compile_context>
chip_gen: v6e
topology: v6e:2x2x1
jax: 0.10.0
libtpu: 0.0.40
codegen_flags: <defaults>
</compile_context>

<pallas_src>
import numpy as np
import jax
import jax.numpy as jnp
from jax import lax
from jax.experimental import pallas as pl
from jax.experimental.pallas import tpu as pltpu

EPS = 1e-5
SLOPE = 0.2       # LeakyReLU negative_slope
LANE = 128        # TPU lane width


def _leaky(x):
    return jnp.where(x > 0, x, SLOPE * x)


def _bn(h, gamma, beta):
    """Training-mode BatchNorm1d over rows (axis 0), biased variance."""
    mu = jnp.mean(h, axis=0, keepdims=True)
    var = jnp.mean(jnp.square(h - mu), axis=0, keepdims=True)
    return (h - mu) * lax.rsqrt(var + EPS) * gamma + beta


def _rnd(d):
    return ((d + LANE - 1) // LANE) * LANE


# -----------------------------------------------------------------------------
# Fused kernel: graph mix -> gcn1 -> bn1 -> graph mix -> gcn2 -> bn2 -> fcn
# Rows are N = roi * bz in r-major order (row n = r*B + b).
# pack rows: 0 b1a, 1 b1b, 2 g1, 3 be1, 4 b2a, 5 b2b, 6 g2, 7 be2,
#            8 bf1, 9 bf2, 10 bf3
# -----------------------------------------------------------------------------
def _fused_kernel(rs_ref, nf_ref,
                  w1a_ref, w1b_ref, w2a_ref, w2b_ref,
                  wf1_ref, wf2_ref, wf3_ref, pk_ref,
                  out_ref, x8_ref):
    HP = w1a_ref.shape[1]        # padded gcn hidden
    P64 = w2a_ref.shape[1]       # padded 64
    P8 = w2b_ref.shape[1]        # padded 8
    R, K8, F1 = wf1_ref.shape    # roi_num, 8 (real gcn2 width), 256
    F2 = wf2_ref.shape[1]        # padded 32
    F3 = wf3_ref.shape[1]        # padded out_size
    B = out_ref.shape[0]

    def mm(a, w_ref):            # bf16 MXU feed, f32 accumulation
        return jnp.dot(a.astype(jnp.bfloat16), w_ref[...],
                       preferred_element_type=jnp.float32)

    rowsum = rs_ref[...]                               # (N, 1) f32
    x = nf_ref[...] * rowsum                           # graph mix #1 (f32)

    # gcn1: Linear -> LeakyReLU -> Linear -> LeakyReLU
    h = _leaky(mm(x, w1a_ref) + pk_ref[0:1, 0:HP])
    h = _leaky(mm(h, w1b_ref) + pk_ref[1:2, 0:HP])
    # bn1 over all N = bz*roi rows
    h = _bn(h, pk_ref[2:3, 0:HP], pk_ref[3:4, 0:HP])
    # graph mix #2 (same row-sums)
    h = h * rowsum
    # gcn2: Linear(->64) -> LeakyReLU -> Linear(->8) -> LeakyReLU   (padded)
    h = _leaky(mm(h, w2a_ref) + pk_ref[4:5, 0:P64])
    h = _leaky(mm(h, w2b_ref) + pk_ref[5:6, 0:P8])
    # bn2
    h = _bn(h, pk_ref[6:7, 0:P8], pk_ref[7:8, 0:P8])

    # Lane-dense stash of the (N, 128) bn2 output in VMEM (no HBM round-trip).
    x8_ref[...] = h

    # fcn layer 1: x.view(bz, roi*8) @ Wf1  ==  sum_r x8[r*B:(r+1)*B, :8] @ Wf1[r]
    def body(r, acc):
        blk = x8_ref[pl.ds(r * B, B), pl.ds(0, K8)]            # (B, 8) f32
        return acc + jnp.dot(blk.astype(jnp.bfloat16), wf1_ref[r],
                             preferred_element_type=jnp.float32)
    y = lax.fori_loop(0, R, body, jnp.zeros((B, F1), jnp.float32))
    y = _leaky(y + pk_ref[8:9, 0:F1])
    y = _leaky(mm(y, wf2_ref) + pk_ref[9:10, 0:F2])
    out_ref[...] = mm(y, wf3_ref) + pk_ref[10:11, 0:F3]


def _full_spec(shape):
    nd = len(shape)
    return pl.BlockSpec(shape, lambda i, _nd=nd: (0,) * _nd)


# -----------------------------------------------------------------------------
# Wrapper: glue reshapes / padding / row-sum precompute + the pallas_call
# -----------------------------------------------------------------------------
def gnn_predictor_forward(m, node_feature, kp, out_size):
    """m: (bz, roi, roi); node_feature: (bz, roi, node_input_dim)."""
    B, R, _ = m.shape
    D = node_feature.shape[-1]
    N = B * R

    DP = kp["w1a"].shape[0]
    HP = kp["w1a"].shape[1]
    P64 = kp["w2a"].shape[1]
    P8 = kp["w2b"].shape[1]
    K8 = kp["wf1"].shape[1]
    F1 = kp["wf1"].shape[2]
    F2 = kp["wf2"].shape[1]
    OUTP = kp["wf3"].shape[1]

    # Row-sum precompute: the kernel never sees the (N, roi) adjacency.
    # r-major row order (row n = r*B + b): BatchNorm / per-row ops are
    # permutation invariant, and it turns the (bz, roi*8) flatten into
    # contiguous row blocks instead of an unsupported lane/sublane reshape.
    rs = jnp.sum(m.astype(jnp.float32), axis=-1).T.reshape(N, 1)
    nf = jnp.transpose(node_feature.astype(jnp.float32), (1, 0, 2)).reshape(N, D)
    nf = jnp.zeros((N, DP), jnp.float32).at[:, :D].set(nf)   # pad to 128 lanes

    inputs = (rs, nf, kp["w1a"], kp["w1b"], kp["w2a"], kp["w2b"],
              kp["wf1"], kp["wf2"], kp["wf3"], kp["pack"])

    flops = (2 * N * (DP * HP + HP * HP + HP * P64 + P64 * P8)
             + 2 * B * (R * K8 * F1 + F1 * F2 + F2 * OUTP))
    bytes_accessed = (sum(int(np.prod(a.shape)) * a.dtype.itemsize for a in inputs)
                      + B * OUTP * 4)
    cost = pl.CostEstimate(flops=int(flops), transcendentals=int(HP + P8),
                           bytes_accessed=int(bytes_accessed))

    out = pl.pallas_call(
        _fused_kernel,
        out_shape=jax.ShapeDtypeStruct((B, OUTP), jnp.float32),
        grid=(1,),
        in_specs=[_full_spec(a.shape) for a in inputs],
        out_specs=_full_spec((B, OUTP)),
        scratch_shapes=[pltpu.VMEM((N, P8), jnp.float32)],
        compiler_params=pltpu.CompilerParams(
            dimension_semantics=("arbitrary",),
            vmem_limit_bytes=32 * 1024 * 1024),
        cost_estimate=cost,
    )(*inputs)
    return out[:, :out_size]


# -----------------------------------------------------------------------------
# Parameters: canonical (torch-like) init + padded/packed kernel-ready copies
# Weights are stored (in, out), i.e. W.T vs torch Linear.
# -----------------------------------------------------------------------------
def init_params(key, node_input_dim, out_size, roi_num, hidden_size):
    keys = jax.random.split(key, 7)

    def lin(k, din, dout):
        kw, kb = jax.random.split(k)
        scale = 1.0 / np.sqrt(din)
        w = jax.random.uniform(kw, (din, dout), jnp.float32, -scale, scale)
        b = jax.random.uniform(kb, (1, dout), jnp.float32, -scale, scale)
        return w, b

    p = {}
    p["w1a"], p["b1a"] = lin(keys[0], node_input_dim, hidden_size)
    p["w1b"], p["b1b"] = lin(keys[1], hidden_size, hidden_size)
    p["g1"] = jnp.ones((1, hidden_size), jnp.float32)    # BN default gamma
    p["be1"] = jnp.zeros((1, hidden_size), jnp.float32)  # BN default beta
    p["w2a"], p["b2a"] = lin(keys[2], hidden_size, 64)
    p["w2b"], p["b2b"] = lin(keys[3], 64, 8)
    p["g2"] = jnp.ones((1, 8), jnp.float32)
    p["be2"] = jnp.zeros((1, 8), jnp.float32)
    p["wf1"], p["bf1"] = lin(keys[4], 8 * roi_num, 256)
    p["wf2"], p["bf2"] = lin(keys[5], 256, 32)
    p["wf3"], p["bf3"] = lin(keys[6], 32, out_size)
    return p


def _pad2(a, rows, cols):
    out = jnp.zeros((rows, cols), jnp.float32)
    return out.at[: a.shape[0], : a.shape[1]].set(a.astype(jnp.float32))


def prepare_params(params, roi_num):
    """Zero-pad feature dims to 128 lanes, cast MXU weights to bf16,
    pack all (1, d) bias / BN vectors into one (11, W) f32 array."""
    D, H = params["w1a"].shape
    H64 = params["w2a"].shape[1]
    K8 = params["w2b"].shape[1]
    F1 = params["wf1"].shape[1]
    F2 = params["wf2"].shape[1]
    OUT = params["wf3"].shape[1]
    DP, HP, P64, P8 = _rnd(D), _rnd(H), _rnd(H64), _rnd(K8)
    F1P, F2P, OUTP = _rnd(F1), _rnd(F2), _rnd(OUT)
    bf16 = jnp.bfloat16

    kp = {
        "w1a": _pad2(params["w1a"], DP, HP).astype(bf16),
        "w1b": _pad2(params["w1b"], HP, HP).astype(bf16),
        "w2a": _pad2(params["w2a"], HP, P64).astype(bf16),
        "w2b": _pad2(params["w2b"], P64, P8).astype(bf16),
        "wf2": _pad2(params["wf2"], F1P, F2P).astype(bf16),
        "wf3": _pad2(params["wf3"], F2P, OUTP).astype(bf16),
    }
    wf1_3d = params["wf1"].reshape(roi_num, K8, F1)
    if F1P != F1:
        wf1_3d = jnp.pad(wf1_3d, ((0, 0), (0, 0), (0, F1P - F1)))
    kp["wf1"] = wf1_3d.astype(bf16)

    vecs = [params["b1a"], params["b1b"], params["g1"], params["be1"],
            params["b2a"], params["b2b"], params["g2"], params["be2"],
            params["bf1"], params["bf2"], params["bf3"]]
    W = max(HP, P64, P8, F1P, F2P, OUTP)
    pk = jnp.zeros((len(vecs), W), jnp.float32)
    for i, v in enumerate(vecs):
        flat = v.reshape(-1).astype(jnp.float32)
        pk = pk.at[i, : flat.shape[0]].set(flat)
    kp["pack"] = pk
    return kp


# -----------------------------------------------------------------------------
# Pure-JAX reference mirroring the PyTorch forward.  Matmuls use the same
# bf16-input / f32-accumulation MXU convention as the kernel.
# -----------------------------------------------------------------------------
def _mm_ref(x, w):
    return jnp.dot(x.astype(jnp.bfloat16), w.astype(jnp.bfloat16),
                   preferred_element_type=jnp.float32)


def reference_forward(m, node_feature, params):
    B, R, _ = m.shape
    rs = jnp.sum(m, axis=-1, keepdims=True)
    x = node_feature * rs
    x = _leaky(_mm_ref(x, params["w1a"]) + params["b1a"])
    x = _leaky(_mm_ref(x, params["w1b"]) + params["b1b"])
    x = x.reshape(B * R, -1)
    x = _bn(x, params["g1"], params["be1"])
    x = x.reshape(B, R, -1)
    x = x * rs
    x = _leaky(_mm_ref(x, params["w2a"]) + params["b2a"])
    x = _leaky(_mm_ref(x, params["w2b"]) + params["b2b"])
    x = x.reshape(B * R, -1)
    x = _bn(x, params["g2"], params["be2"])
    x = x.reshape(B, -1)
    x = _leaky(_mm_ref(x, params["wf1"]) + params["bf1"])
    x = _leaky(_mm_ref(x, params["wf2"]) + params["bf2"])
    return _mm_ref(x, params["wf3"]) + params["bf3"]


if __name__ == "__main__":
    NODE_INPUT_DIM = 16
    OUT_SIZE = 2
    ROI_NUM = 8
    HIDDEN = 32
    B = 2

    key = jax.random.PRNGKey(0)
    k_p, k_m, k_n = jax.random.split(key, 3)
    params = init_params(k_p, NODE_INPUT_DIM, OUT_SIZE, ROI_NUM, HIDDEN)
    kparams = prepare_params(params, ROI_NUM)
    m = jax.random.normal(k_m, (B, ROI_NUM, ROI_NUM), jnp.float32)
    node_feature = jax.random.normal(k_n, (B, ROI_NUM, NODE_INPUT_DIM),
                                     jnp.float32)

    out = gnn_predictor_forward(m, node_feature, kparams, OUT_SIZE)
    out = jax.block_until_ready(out)

    ref = reference_forward(m, node_feature, params)
    if not np.allclose(np.asarray(out), np.asarray(ref), rtol=1e-3, atol=1e-3):
        raise AssertionError("Pallas output mismatch vs pure-JAX reference")
    print("KERNEL_OK")
</pallas_src>

<mosaic_0001>
module attributes {stable_mosaic.version = 11 : i64} {
  func.func @_fused_kernel(%arg0: i32, %arg1: memref<16x1xf32, #tpu.memory_space<vmem>>, %arg2: memref<16x128xf32, #tpu.memory_space<vmem>>, %arg3: memref<128x128xbf16, #tpu.memory_space<vmem>>, %arg4: memref<128x128xbf16, #tpu.memory_space<vmem>>, %arg5: memref<128x128xbf16, #tpu.memory_space<vmem>>, %arg6: memref<128x128xbf16, #tpu.memory_space<vmem>>, %arg7: memref<8x8x256xbf16, #tpu.memory_space<vmem>>, %arg8: memref<256x128xbf16, #tpu.memory_space<vmem>>, %arg9: memref<128x128xbf16, #tpu.memory_space<vmem>>, %arg10: memref<11x256xf32, #tpu.memory_space<vmem>>, %arg11: memref<2x128xf32, #tpu.memory_space<vmem>>, %arg12: memref<16x128xf32, #tpu.memory_space<vmem>>) attributes {dimension_semantics = [#tpu.dimension_semantics<arbitrary>], iteration_bounds = array<i64: 1>, scalar_prefetch = 0 : i64, scratch_operands = 1 : i64, tpu.core_type = #tpu.core_type<tc>, window_params = [{pipeline_mode = #tpu.pipeline_mode<synchronous>, transform_indices = @transform_0, window_bounds = array<i64: 16, 1>}, {pipeline_mode = #tpu.pipeline_mode<synchronous>, transform_indices = @transform_1, window_bounds = array<i64: 16, 128>}, {pipeline_mode = #tpu.pipeline_mode<synchronous>, transform_indices = @transform_2, window_bounds = array<i64: 128, 128>}, {pipeline_mode = #tpu.pipeline_mode<synchronous>, transform_indices = @transform_3, window_bounds = array<i64: 128, 128>}, {pipeline_mode = #tpu.pipeline_mode<synchronous>, transform_indices = @transform_4, window_bounds = array<i64: 128, 128>}, {pipeline_mode = #tpu.pipeline_mode<synchronous>, transform_indices = @transform_5, window_bounds = array<i64: 128, 128>}, {pipeline_mode = #tpu.pipeline_mode<synchronous>, transform_indices = @transform_6, window_bounds = array<i64: 8, 8, 256>}, {pipeline_mode = #tpu.pipeline_mode<synchronous>, transform_indices = @transform_7, window_bounds = array<i64: 256, 128>}, {pipeline_mode = #tpu.pipeline_mode<synchronous>, transform_indices = @transform_8, window_bounds = array<i64: 128, 128>}, {pipeline_mode = #tpu.pipeline_mode<synchronous>, transform_indices = @transform_9, window_bounds = array<i64: 11, 256>}, {pipeline_mode = #tpu.pipeline_mode<synchronous>, transform_indices = @transform_10, window_bounds = array<i64: 2, 128>}]} {
    %c0 = arith.constant 0 : index
    %c0_0 = arith.constant 0 : index
    %0 = vector.load %arg1[%c0, %c0_0] : memref<16x1xf32, #tpu.memory_space<vmem>>, vector<16x1xf32>
    %c0_1 = arith.constant 0 : index
    %c0_2 = arith.constant 0 : index
    %1 = vector.load %arg2[%c0_1, %c0_2] : memref<16x128xf32, #tpu.memory_space<vmem>>, vector<16x128xf32>
    %2 = vector.broadcast %0 : vector<16x1xf32> to vector<16x128xf32>
    %3 = arith.mulf %1, %2 : vector<16x128xf32>
    %4 = arith.truncf %3 : vector<16x128xf32> to vector<16x128xbf16>
    %c0_3 = arith.constant 0 : index
    %c0_4 = arith.constant 0 : index
    %5 = vector.load %arg3[%c0_3, %c0_4] : memref<128x128xbf16, #tpu.memory_space<vmem>>, vector<128x128xbf16>
    %cst = arith.constant dense<0.000000e+00> : vector<16x128xf32>
    %6 = tpu.matmul %4, %5, %cst {dimension_numbers = #tpu.dot_dimension_numbers<[1], [0], [0], [1], [0, 0, 1, 1], [], []>} : vector<16x128xbf16>, vector<128x128xbf16>, vector<16x128xf32> -> vector<16x128xf32>
    %c0_5 = arith.constant 0 : index
    %c0_6 = arith.constant 0 : index
    %7 = vector.load %arg10[%c0_5, %c0_6] : memref<11x256xf32, #tpu.memory_space<vmem>>, vector<1x128xf32>
    %8 = vector.broadcast %7 : vector<1x128xf32> to vector<16x128xf32>
    %9 = arith.addf %6, %8 : vector<16x128xf32>
    %cst_7 = arith.constant 0.000000e+00 : f32
    %10 = vector.broadcast %cst_7 : f32 to vector<16x128xf32>
    %11 = arith.cmpf ogt, %9, %10 : vector<16x128xf32>
    %cst_8 = arith.constant 2.000000e-01 : f32
    %12 = vector.broadcast %cst_8 : f32 to vector<16x128xf32>
    %13 = arith.mulf %12, %9 : vector<16x128xf32>
    %14 = arith.select %11, %9, %13 : vector<16x128xi1>, vector<16x128xf32>
    %15 = arith.truncf %14 : vector<16x128xf32> to vector<16x128xbf16>
    %c0_9 = arith.constant 0 : index
    %c0_10 = arith.constant 0 : index
    %16 = vector.load %arg4[%c0_9, %c0_10] : memref<128x128xbf16, #tpu.memory_space<vmem>>, vector<128x128xbf16>
    %cst_11 = arith.constant dense<0.000000e+00> : vector<16x128xf32>
    %17 = tpu.matmul %15, %16, %cst_11 {dimension_numbers = #tpu.dot_dimension_numbers<[1], [0], [0], [1], [0, 0, 1, 1], [], []>} : vector<16x128xbf16>, vector<128x128xbf16>, vector<16x128xf32> -> vector<16x128xf32>
    %c1 = arith.constant 1 : index
    %c0_12 = arith.constant 0 : index
    %18 = vector.load %arg10[%c1, %c0_12] : memref<11x256xf32, #tpu.memory_space<vmem>>, vector<1x128xf32>
    %19 = vector.broadcast %18 : vector<1x128xf32> to vector<16x128xf32>
    %20 = arith.addf %17, %19 : vector<16x128xf32>
    %cst_13 = arith.constant 0.000000e+00 : f32
    %21 = vector.broadcast %cst_13 : f32 to vector<16x128xf32>
    %22 = arith.cmpf ogt, %20, %21 : vector<16x128xf32>
    %cst_14 = arith.constant 2.000000e-01 : f32
    %23 = vector.broadcast %cst_14 : f32 to vector<16x128xf32>
    %24 = arith.mulf %23, %20 : vector<16x128xf32>
    %25 = arith.select %22, %20, %24 : vector<16x128xi1>, vector<16x128xf32>
    %c2 = arith.constant 2 : index
    %c0_15 = arith.constant 0 : index
    %26 = vector.load %arg10[%c2, %c0_15] : memref<11x256xf32, #tpu.memory_space<vmem>>, vector<1x128xf32>
    %c3 = arith.constant 3 : index
    %c0_16 = arith.constant 0 : index
    %27 = vector.load %arg10[%c3, %c0_16] : memref<11x256xf32, #tpu.memory_space<vmem>>, vector<1x128xf32>
    %cst_17 = arith.constant dense<0.000000e+00> : vector<128xf32>
    %28 = vector.multi_reduction <add>, %25, %cst_17 [0] : vector<16x128xf32> to vector<128xf32>
    %29 = vector.shape_cast %28 : vector<128xf32> to vector<1x128xf32>
    %cst_18 = arith.constant 1.600000e+01 : f32
    %30 = vector.broadcast %cst_18 : f32 to vector<1x128xf32>
    %31 = arith.divf %29, %30 : vector<1x128xf32>
    %32 = vector.broadcast %31 : vector<1x128xf32> to vector<16x128xf32>
    %33 = arith.subf %25, %32 : vector<16x128xf32>
    %34 = arith.mulf %33, %33 : vector<16x128xf32>
    %cst_19 = arith.constant dense<0.000000e+00> : vector<128xf32>
    %35 = vector.multi_reduction <add>, %34, %cst_19 [0] : vector<16x128xf32> to vector<128xf32>
    %36 = vector.shape_cast %35 : vector<128xf32> to vector<1x128xf32>
    %cst_20 = arith.constant 1.600000e+01 : f32
    %37 = vector.broadcast %cst_20 : f32 to vector<1x128xf32>
    %38 = arith.divf %36, %37 : vector<1x128xf32>
    %39 = vector.broadcast %31 : vector<1x128xf32> to vector<16x128xf32>
    %40 = arith.subf %25, %39 : vector<16x128xf32>
    %cst_21 = arith.constant 9.99999974E-6 : f32
    %41 = vector.broadcast %cst_21 : f32 to vector<1x128xf32>
    %42 = arith.addf %38, %41 : vector<1x128xf32>
    %43 = math.rsqrt %42 : vector<1x128xf32>
    %44 = vector.broadcast %43 : vector<1x128xf32> to vector<16x128xf32>
    %45 = arith.mulf %40, %44 : vector<16x128xf32>
    %46 = vector.broadcast %26 : vector<1x128xf32> to vector<16x128xf32>
    %47 = arith.mulf %45, %46 : vector<16x128xf32>
    %48 = vector.broadcast %27 : vector<1x128xf32> to vector<16x128xf32>
    %49 = arith.addf %47, %48 : vector<16x128xf32>
    %50 = vector.broadcast %0 : vector<16x1xf32> to vector<16x128xf32>
    %51 = arith.mulf %49, %50 : vector<16x128xf32>
    %52 = arith.truncf %51 : vector<16x128xf32> to vector<16x128xbf16>
    %c0_22 = arith.constant 0 : index
    %c0_23 = arith.constant 0 : index
    %53 = vector.load %arg5[%c0_22, %c0_23] : memref<128x128xbf16, #tpu.memory_space<vmem>>, vector<128x128xbf16>
    %cst_24 = arith.constant dense<0.000000e+00> : vector<16x128xf32>
    %54 = tpu.matmul %52, %53, %cst_24 {dimension_numbers = #tpu.dot_dimension_numbers<[1], [0], [0], [1], [0, 0, 1, 1], [], []>} : vector<16x128xbf16>, vector<128x128xbf16>, vector<16x128xf32> -> vector<16x128xf32>
    %c4 = arith.constant 4 : index
    %c0_25 = arith.constant 0 : index
    %55 = vector.load %arg10[%c4, %c0_25] : memref<11x256xf32, #tpu.memory_space<vmem>>, vector<1x128xf32>
    %56 = vector.broadcast %55 : vector<1x128xf32> to vector<16x128xf32>
    %57 = arith.addf %54, %56 : vector<16x128xf32>
    %cst_26 = arith.constant 0.000000e+00 : f32
    %58 = vector.broadcast %cst_26 : f32 to vector<16x128xf32>
    %59 = arith.cmpf ogt, %57, %58 : vector<16x128xf32>
    %cst_27 = arith.constant 2.000000e-01 : f32
    %60 = vector.broadcast %cst_27 : f32 to vector<16x128xf32>
    %61 = arith.mulf %60, %57 : vector<16x128xf32>
    %62 = arith.select %59, %57, %61 : vector<16x128xi1>, vector<16x128xf32>
    %63 = arith.truncf %62 : vector<16x128xf32> to vector<16x128xbf16>
    %c0_28 = arith.constant 0 : index
    %c0_29 = arith.constant 0 : index
    %64 = vector.load %arg6[%c0_28, %c0_29] : memref<128x128xbf16, #tpu.memory_space<vmem>>, vector<128x128xbf16>
    %cst_30 = arith.constant dense<0.000000e+00> : vector<16x128xf32>
    %65 = tpu.matmul %63, %64, %cst_30 {dimension_numbers = #tpu.dot_dimension_numbers<[1], [0], [0], [1], [0, 0, 1, 1], [], []>} : vector<16x128xbf16>, vector<128x128xbf16>, vector<16x128xf32> -> vector<16x128xf32>
    %c5 = arith.constant 5 : index
    %c0_31 = arith.constant 0 : index
    %66 = vector.load %arg10[%c5, %c0_31] : memref<11x256xf32, #tpu.memory_space<vmem>>, vector<1x128xf32>
    %67 = vector.broadcast %66 : vector<1x128xf32> to vector<16x128xf32>
    %68 = arith.addf %65, %67 : vector<16x128xf32>
    %cst_32 = arith.constant 0.000000e+00 : f32
    %69 = vector.broadcast %cst_32 : f32 to vector<16x128xf32>
    %70 = arith.cmpf ogt, %68, %69 : vector<16x128xf32>
    %cst_33 = arith.constant 2.000000e-01 : f32
    %71 = vector.broadcast %cst_33 : f32 to vector<16x128xf32>
    %72 = arith.mulf %71, %68 : vector<16x128xf32>
    %73 = arith.select %70, %68, %72 : vector<16x128xi1>, vector<16x128xf32>
    %c6 = arith.constant 6 : index
    %c0_34 = arith.constant 0 : index
    %74 = vector.load %arg10[%c6, %c0_34] : memref<11x256xf32, #tpu.memory_space<vmem>>, vector<1x128xf32>
    %c7 = arith.constant 7 : index
    %c0_35 = arith.constant 0 : index
    %75 = vector.load %arg10[%c7, %c0_35] : memref<11x256xf32, #tpu.memory_space<vmem>>, vector<1x128xf32>
    %cst_36 = arith.constant dense<0.000000e+00> : vector<128xf32>
    %76 = vector.multi_reduction <add>, %73, %cst_36 [0] : vector<16x128xf32> to vector<128xf32>
    %77 = vector.shape_cast %76 : vector<128xf32> to vector<1x128xf32>
    %cst_37 = arith.constant 1.600000e+01 : f32
    %78 = vector.broadcast %cst_37 : f32 to vector<1x128xf32>
    %79 = arith.divf %77, %78 : vector<1x128xf32>
    %80 = vector.broadcast %79 : vector<1x128xf32> to vector<16x128xf32>
    %81 = arith.subf %73, %80 : vector<16x128xf32>
    %82 = arith.mulf %81, %81 : vector<16x128xf32>
    %cst_38 = arith.constant dense<0.000000e+00> : vector<128xf32>
    %83 = vector.multi_reduction <add>, %82, %cst_38 [0] : vector<16x128xf32> to vector<128xf32>
    %84 = vector.shape_cast %83 : vector<128xf32> to vector<1x128xf32>
    %cst_39 = arith.constant 1.600000e+01 : f32
    %85 = vector.broadcast %cst_39 : f32 to vector<1x128xf32>
    %86 = arith.divf %84, %85 : vector<1x128xf32>
    %87 = vector.broadcast %79 : vector<1x128xf32> to vector<16x128xf32>
    %88 = arith.subf %73, %87 : vector<16x128xf32>
    %cst_40 = arith.constant 9.99999974E-6 : f32
    %89 = vector.broadcast %cst_40 : f32 to vector<1x128xf32>
    %90 = arith.addf %86, %89 : vector<1x128xf32>
    %91 = math.rsqrt %90 : vector<1x128xf32>
    %92 = vector.broadcast %91 : vector<1x128xf32> to vector<16x128xf32>
    %93 = arith.mulf %88, %92 : vector<16x128xf32>
    %94 = vector.broadcast %74 : vector<1x128xf32> to vector<16x128xf32>
    %95 = arith.mulf %93, %94 : vector<16x128xf32>
    %96 = vector.broadcast %75 : vector<1x128xf32> to vector<16x128xf32>
    %97 = arith.addf %95, %96 : vector<16x128xf32>
    %c0_41 = arith.constant 0 : index
    %c0_42 = arith.constant 0 : index
    %98 = vector.load %arg12[%c0_41, %c0_42] : memref<16x128xf32, #tpu.memory_space<vmem>>, vector<16x128xf32>
    tpu.vector_store %arg12[%c0_41, %c0_42], %97 {strides = array<i32>} : memref<16x128xf32, #tpu.memory_space<vmem>>, vector<16x128xf32>,
    %cst_43 = arith.constant 0.000000e+00 : f32
    %99 = vector.broadcast %cst_43 : f32 to vector<2x256xf32>
    %c0_i32 = arith.constant 0 : i32
    %c8_i32 = arith.constant 8 : i32
    %100 = arith.addi %c0_i32, %c8_i32 : i32
    %c1_i32 = arith.constant 1 : i32
    %101 = scf.for %arg13 = %c0_i32 to %100 step %c1_i32 iter_args(%arg14 = %99) -> (vector<2x256xf32>)  : i32 {
      %c2_i32 = arith.constant 2 : i32
      %128 = arith.muli %arg13, %c2_i32 : i32
      %129 = arith.index_cast %128 : i32 to index
      %c0_60 = arith.constant 0 : index
      %130 = vector.load %arg12[%129, %c0_60] : memref<16x128xf32, #tpu.memory_space<vmem>>, vector<2x8xf32>
      %131 = arith.truncf %130 : vector<2x8xf32> to vector<2x8xbf16>
      %132 = arith.index_cast %arg13 : i32 to index
      %c0_61 = arith.constant 0 : index
      %c0_62 = arith.constant 0 : index
      %133 = vector.load %arg7[%132, %c0_61, %c0_62] : memref<8x8x256xbf16, #tpu.memory_space<vmem>>, vector<1x8x256xbf16>
      %134 = vector.shape_cast %133 : vector<1x8x256xbf16> to vector<8x256xbf16>
      %cst_63 = arith.constant dense<0.000000e+00> : vector<2x256xf32>
      %135 = tpu.matmul %131, %134, %cst_63 {dimension_numbers = #tpu.dot_dimension_numbers<[1], [0], [0], [1], [0, 0, 1, 1], [], []>} : vector<2x8xbf16>, vector<8x256xbf16>, vector<2x256xf32> -> vector<2x256xf32>
      %136 = arith.addf %arg14, %135 : vector<2x256xf32>
      scf.yield %136 : vector<2x256xf32>
    }
    %c8_i32_44 = arith.constant 8 : i32
    %c8 = arith.constant 8 : index
    %c0_45 = arith.constant 0 : index
    %102 = vector.load %arg10[%c8, %c0_45] : memref<11x256xf32, #tpu.memory_space<vmem>>, vector<1x256xf32>
    %103 = vector.broadcast %102 : vector<1x256xf32> to vector<2x256xf32>
    %104 = arith.addf %101, %103 : vector<2x256xf32>
    %cst_46 = arith.constant 0.000000e+00 : f32
    %105 = vector.broadcast %cst_46 : f32 to vector<2x256xf32>
    %106 = arith.cmpf ogt, %104, %105 : vector<2x256xf32>
    %cst_47 = arith.constant 2.000000e-01 : f32
    %107 = vector.broadcast %cst_47 : f32 to vector<2x256xf32>
    %108 = arith.mulf %107, %104 : vector<2x256xf32>
    %109 = arith.select %106, %104, %108 : vector<2x256xi1>, vector<2x256xf32>
    %110 = arith.truncf %109 : vector<2x256xf32> to vector<2x256xbf16>
    %c0_48 = arith.constant 0 : index
    %c0_49 = arith.constant 0 : index
    %111 = vector.load %arg8[%c0_48, %c0_49] : memref<256x128xbf16, #tpu.memory_space<vmem>>, vector<256x128xbf16>
    %cst_50 = arith.constant dense<0.000000e+00> : vector<2x128xf32>
    %112 = tpu.matmul %110, %111, %cst_50 {dimension_numbers = #tpu.dot_dimension_numbers<[1], [0], [0], [1], [0, 0, 1, 1], [], []>} : vector<2x256xbf16>, vector<256x128xbf16>, vector<2x128xf32> -> vector<2x128xf32>
    %c9 = arith.constant 9 : index
    %c0_51 = arith.constant 0 : index
    %113 = vector.load %arg10[%c9, %c0_51] : memref<11x256xf32, #tpu.memory_space<vmem>>, vector<1x128xf32>
    %114 = vector.broadcast %113 : vector<1x128xf32> to vector<2x128xf32>
    %115 = arith.addf %112, %114 : vector<2x128xf32>
    %cst_52 = arith.constant 0.000000e+00 : f32
    %116 = vector.broadcast %cst_52 : f32 to vector<2x128xf32>
    %117 = arith.cmpf ogt, %115, %116 : vector<2x128xf32>
    %cst_53 = arith.constant 2.000000e-01 : f32
    %118 = vector.broadcast %cst_53 : f32 to vector<2x128xf32>
    %119 = arith.mulf %118, %115 : vector<2x128xf32>
    %120 = arith.select %117, %115, %119 : vector<2x128xi1>, vector<2x128xf32>
    %121 = arith.truncf %120 : vector<2x128xf32> to vector<2x128xbf16>
    %c0_54 = arith.constant 0 : index
    %c0_55 = arith.constant 0 : index
    %122 = vector.load %arg9[%c0_54, %c0_55] : memref<128x128xbf16, #tpu.memory_space<vmem>>, vector<128x128xbf16>
    %cst_56 = arith.constant dense<0.000000e+00> : vector<2x128xf32>
    %123 = tpu.matmul %121, %122, %cst_56 {dimension_numbers = #tpu.dot_dimension_numbers<[1], [0], [0], [1], [0, 0, 1, 1], [], []>} : vector<2x128xbf16>, vector<128x128xbf16>, vector<2x128xf32> -> vector<2x128xf32>
    %c10 = arith.constant 10 : index
    %c0_57 = arith.constant 0 : index
    %124 = vector.load %arg10[%c10, %c0_57] : memref<11x256xf32, #tpu.memory_space<vmem>>, vector<1x128xf32>
    %125 = vector.broadcast %124 : vector<1x128xf32> to vector<2x128xf32>
    %126 = arith.addf %123, %125 : vector<2x128xf32>
    %c0_58 = arith.constant 0 : index
    %c0_59 = arith.constant 0 : index
    %127 = vector.load %arg11[%c0_58, %c0_59] : memref<2x128xf32, #tpu.memory_space<vmem>>, vector<2x128xf32>
    tpu.vector_store %arg11[%c0_58, %c0_59], %126 {strides = array<i32>} : memref<2x128xf32, #tpu.memory_space<vmem>>, vector<2x128xf32>,
    return
  }
  func.func @transform_0(%arg0: i32) -> (i32, i32) {
    %c0_i32 = arith.constant 0 : i32
    %c0_i32_0 = arith.constant 0 : i32
    %c0_i32_1 = arith.constant 0 : i32
    return %c0_i32, %c0_i32_0 : i32, i32
  }
  func.func @transform_1(%arg0: i32) -> (i32, i32) {
    %c0_i32 = arith.constant 0 : i32
    %c0_i32_0 = arith.constant 0 : i32
    %c0_i32_1 = arith.constant 0 : i32
    return %c0_i32, %c0_i32_0 : i32, i32
  }
  func.func @transform_2(%arg0: i32) -> (i32, i32) {
    %c0_i32 = arith.constant 0 : i32
    %c0_i32_0 = arith.constant 0 : i32
    %c0_i32_1 = arith.constant 0 : i32
    return %c0_i32, %c0_i32_0 : i32, i32
  }
  func.func @transform_3(%arg0: i32) -> (i32, i32) {
    %c0_i32 = arith.constant 0 : i32
    %c0_i32_0 = arith.constant 0 : i32
    %c0_i32_1 = arith.constant 0 : i32
    return %c0_i32, %c0_i32_0 : i32, i32
  }
  func.func @transform_4(%arg0: i32) -> (i32, i32) {
    %c0_i32 = arith.constant 0 : i32
    %c0_i32_0 = arith.constant 0 : i32
    %c0_i32_1 = arith.constant 0 : i32
    return %c0_i32, %c0_i32_0 : i32, i32
  }
  func.func @transform_5(%arg0: i32) -> (i32, i32) {
    %c0_i32 = arith.constant 0 : i32
    %c0_i32_0 = arith.constant 0 : i32
    %c0_i32_1 = arith.constant 0 : i32
    return %c0_i32, %c0_i32_0 : i32, i32
  }
  func.func @transform_6(%arg0: i32) -> (i32, i32, i32) {
    %c0_i32 = arith.constant 0 : i32
    %c0_i32_0 = arith.constant 0 : i32
    %c0_i32_1 = arith.constant 0 : i32
    %c0_i32_2 = arith.constant 0 : i32
    return %c0_i32, %c0_i32_0, %c0_i32_1 : i32, i32, i32
  }
  func.func @transform_7(%arg0: i32) -> (i32, i32) {
    %c0_i32 = arith.constant 0 : i32
    %c0_i32_0 = arith.constant 0 : i32
    %c0_i32_1 = arith.constant 0 : i32
    return %c0_i32, %c0_i32_0 : i32, i32
  }
  func.func @transform_8(%arg0: i32) -> (i32, i32) {
    %c0_i32 = arith.constant 0 : i32
    %c0_i32_0 = arith.constant 0 : i32
    %c0_i32_1 = arith.constant 0 : i32
    return %c0_i32, %c0_i32_0 : i32, i32
  }
  func.func @transform_9(%arg0: i32) -> (i32, i32) {
    %c0_i32 = arith.constant 0 : i32
    %c0_i32_0 = arith.constant 0 : i32
    %c0_i32_1 = arith.constant 0 : i32
    return %c0_i32, %c0_i32_0 : i32, i32
  }
  func.func @transform_10(%arg0: i32) -> (i32, i32) {
    %c0_i32 = arith.constant 0 : i32
    %c0_i32_0 = arith.constant 0 : i32
    %c0_i32_1 = arith.constant 0 : i32
    return %c0_i32, %c0_i32_0 : i32, i32
  }
}

</mosaic_0001>

<llo_original>
// kernel: tpu_custom_call.1
$region0: #{tpu_custom_call.1}
  #allocation0 [shape = 'u32[]', space=smem, size = 0x4, offset = 0x4, fixed_abs, tag = 'smem constant byte address 0x4 - core index']
  #allocation1 [shape = 'u32[144,128]{1,0:T(1,128)}', space=vmem, size = 0x12000, scoped, tag = 'internal scratch']
  #allocation2 [shape = 'f32[16,128]{1,0:T(8,128)}', space=vmem, size = 0x2000, scoped, tag = 'scratch operand']
  %s0 = inlined_call_operand.vmem [shape: f32[16,1], index: 0, kind: input, shape index: {}]
  %s1 = inlined_call_operand.hbm [shape: f32[16,128], index: 1, kind: input, shape index: {}]
  %s2 = inlined_call_operand.hbm [shape: bf16[128,128], index: 2, kind: input, shape index: {}]
  %s3 = inlined_call_operand.hbm [shape: bf16[128,128], index: 3, kind: input, shape index: {}]
  %s4 = inlined_call_operand.hbm [shape: bf16[128,128], index: 4, kind: input, shape index: {}]
  %s5 = inlined_call_operand.hbm [shape: bf16[128,128], index: 5, kind: input, shape index: {}]
  %s6 = inlined_call_operand.hbm [shape: bf16[8,8,256], index: 6, kind: input, shape index: {}]
  %s7 = inlined_call_operand.hbm [shape: bf16[256,128], index: 7, kind: input, shape index: {}]
  %s8 = inlined_call_operand.hbm [shape: bf16[128,128], index: 8, kind: input, shape index: {}]
  %s9 = inlined_call_operand.vmem [shape: f32[11,256], index: 9, kind: input, shape index: {}]
  %s10 = inlined_call_operand.hbm [shape: f32[2,128], index: 10, kind: output, shape index: {}]
  %s11 = sld [smem:[#allocation0]]
  $region89: #{tpu_custom_call.1} parent=0
    _
  %s13 = ssub.s32 1, %s11
  %s14 = scalar_select 0, %s13, %s11
  $region1: #{tpu_custom_call.1} parent=0
    #allocation3 [shape = 'u8[8192]{0}', space=vmem, size = 0x2000, scoped, tag = 'input window, operand 1, single buffered']
    #allocation4 [shape = 's32[1]{0}', space=sflag, size = 0x4, scoped, tag = 'scoped memory for tpu_custom_call.1']
    #allocation5 [shape = 's32[1]{0}', space=sflag, size = 0x4, scoped, tag = 'scoped memory for tpu_custom_call.1']
    #allocation6 [shape = 'u8[32768]{0}', space=vmem, size = 0x8000, scoped, tag = 'input window, operand 2, single buffered']
    #allocation7 [shape = 's32[1]{0}', space=sflag, size = 0x4, scoped, tag = 'scoped memory for tpu_custom_call.1']
    #allocation8 [shape = 'u8[32768]{0}', space=vmem, size = 0x8000, scoped, tag = 'input window, operand 3, single buffered']
    #allocation9 [shape = 'u8[32768]{0}', space=vmem, size = 0x8000, scoped, tag = 'input window, operand 4, single buffered']
    #allocation10 [shape = 's32[1]{0}', space=sflag, size = 0x4, scoped, tag = 'scoped memory for tpu_custom_call.1']
    #allocation11 [shape = 'u8[32768]{0}', space=vmem, size = 0x8000, scoped, tag = 'input window, operand 5, single buffered']
    #allocation12 [shape = 'u8[32768]{0}', space=vmem, size = 0x8000, scoped, tag = 'input window, operand 6, single buffered']
    #allocation13 [shape = 's32[1]{0}', space=sflag, size = 0x4, scoped, tag = 'scoped memory for tpu_custom_call.1']
    #allocation14 [shape = 'u8[65536]{0}', space=vmem, size = 0x10000, scoped, tag = 'input window, operand 7, single buffered']
    #allocation15 [shape = 'u8[32768]{0}', space=vmem, size = 0x8000, scoped, tag = 'input window, operand 8, single buffered']
    #allocation16 [shape = 's32[1]{0}', space=sflag, size = 0x4, scoped, tag = 'scoped memory for tpu_custom_call.1']
    #allocation17 [shape = 'u8[1024]{0}', space=vmem, size = 0x400, scoped, tag = 'output window, operand 0, single buffered']
    %15 = vsyncpa [#allocation4], 0
    %16 = vsyncpa [#allocation7], 0
    %17 = vsyncpa [#allocation10], 0
    %18 = vsyncpa [#allocation13], 0
    %19 = vsyncpa [#allocation16], 0
    %20 = vsyncpa [#allocation5], 0
    // Predicated region
    $region2: #{tpu_custom_call.1} parent=1 // pred_check
      _
    $region3: #{tpu_custom_call.1} parent=1 // pred_check_branch
      %22 = sbr.rel (0) target = $region5
    $region4: #{tpu_custom_call.1} parent=1 // pred_region
      _
    $region5: #{tpu_custom_call.1} parent=1 // pred_fallthru
      _
    // Predicated region
    $region6: #{tpu_custom_call.1} parent=1 // pred_check
      _
    $region7: #{tpu_custom_call.1} parent=1 // pred_check_branch
      %24 = sbr.rel (0) target = $region9
    $region8: #{tpu_custom_call.1} parent=1 // pred_region
      %s26 = ssub.s32 256, 256
      %27 = vsyncadd [#allocation4], %s26
      %s28 = sshll.u32 [#allocation3], 4
      %s29 = int_to_ptr.vmem [resolvable:$true] %s28
      %34 = dma.hbm_to_vmem [thread:$0]  %s1, 256, %s29, [#allocation4], 128, 128, 8
    $region9: #{tpu_custom_call.1} parent=1 // pred_fallthru
      _
    // Predicated region
    $region10: #{tpu_custom_call.1} parent=1 // pred_check
      _
    $region11: #{tpu_custom_call.1} parent=1 // pred_check_branch
      %36 = sbr.rel (0) target = $region13
    $region12: #{tpu_custom_call.1} parent=1 // pred_region
      %s38 = ssub.s32 1024, 1024
      %39 = vsyncadd [#allocation7], %s38
      %s40 = sshll.u32 [#allocation6], 4
      %s41 = int_to_ptr.vmem [resolvable:$true] %s40
      %46 = dma.hbm_to_vmem [thread:$0]  %s2, 1024, %s41, [#allocation7], 64, 64, 4
    $region13: #{tpu_custom_call.1} parent=1 // pred_fallthru
      _
    // Predicated region
    $region14: #{tpu_custom_call.1} parent=1 // pred_check
      _
    $region15: #{tpu_custom_call.1} parent=1 // pred_check_branch
      %48 = sbr.rel (0) target = $region17
    $region16: #{tpu_custom_call.1} parent=1 // pred_region
      %s50 = ssub.s32 1024, 1024
      %51 = vsyncadd [#allocation7], %s50
      %s52 = sshll.u32 [#allocation8], 4
      %s53 = int_to_ptr.vmem [resolvable:$true] %s52
      %58 = dma.hbm_to_vmem [thread:$0]  %s3, 1024, %s53, [#allocation7], 64, 64, 4
    $region17: #{tpu_custom_call.1} parent=1 // pred_fallthru
      _
    // Predicated region
    $region18: #{tpu_custom_call.1} parent=1 // pred_check
      _
    $region19: #{tpu_custom_call.1} parent=1 // pred_check_branch
      %60 = sbr.rel (0) target = $region21
    $region20: #{tpu_custom_call.1} parent=1 // pred_region
      %s62 = ssub.s32 1024, 1024
      %63 = vsyncadd [#allocation10], %s62
      %s64 = sshll.u32 [#allocation9], 4
      %s65 = int_to_ptr.vmem [resolvable:$true] %s64
      %70 = dma.hbm_to_vmem [thread:$0]  %s4, 1024, %s65, [#allocation10], 64, 64, 4
    $region21: #{tpu_custom_call.1} parent=1 // pred_fallthru
      _
    // Predicated region
    $region22: #{tpu_custom_call.1} parent=1 // pred_check
      _
    $region23: #{tpu_custom_call.1} parent=1 // pred_check_branch
      %72 = sbr.rel (0) target = $region25
    $region24: #{tpu_custom_call.1} parent=1 // pred_region
      %s74 = ssub.s32 1024, 1024
      %75 = vsyncadd [#allocation10], %s74
      %s76 = sshll.u32 [#allocation11], 4
      %s77 = int_to_ptr.vmem [resolvable:$true] %s76
      %82 = dma.hbm_to_vmem [thread:$0]  %s5, 1024, %s77, [#allocation10], 64, 64, 4
    $region25: #{tpu_custom_call.1} parent=1 // pred_fallthru
      _
    // Predicated region
    $region26: #{tpu_custom_call.1} parent=1 // pred_check
      _
    $region27: #{tpu_custom_call.1} parent=1 // pred_check_branch
      %84 = sbr.rel (0) target = $region29
    $region28: #{tpu_custom_call.1} parent=1 // pred_region
      %s86 = ssub.s32 1024, 1024
      %87 = vsyncadd [#allocation13], %s86
      %s88 = sshll.u32 [#allocation12], 4
      %s89 = int_to_ptr.vmem [resolvable:$true] %s88
      %94 = dma.hbm_to_vmem [thread:$0]  %s6, 1024, %s89, [#allocation13], 128, 128, 8
    $region29: #{tpu_custom_call.1} parent=1 // pred_fallthru
      _
    // Predicated region
    $region30: #{tpu_custom_call.1} parent=1 // pred_check
      _
    $region31: #{tpu_custom_call.1} parent=1 // pred_check_branch
      %96 = sbr.rel (0) target = $region33
    $region32: #{tpu_custom_call.1} parent=1 // pred_region
      %s98 = ssub.s32 2048, 2048
      %99 = vsyncadd [#allocation13], %s98
      %s100 = sshll.u32 [#allocation14], 4
      %s101 = int_to_ptr.vmem [resolvable:$true] %s100
      %106 = dma.hbm_to_vmem [thread:$0]  %s7, 2048, %s101, [#allocation13], 64, 64, 4
    $region33: #{tpu_custom_call.1} parent=1 // pred_fallthru
      _
    // Predicated region
    $region34: #{tpu_custom_call.1} parent=1 // pred_check
      _
    $region35: #{tpu_custom_call.1} parent=1 // pred_check_branch
      %108 = sbr.rel (0) target = $region37
    $region36: #{tpu_custom_call.1} parent=1 // pred_region
      %s110 = ssub.s32 1024, 1024
      %111 = vsyncadd [#allocation16], %s110
      %s112 = sshll.u32 [#allocation15], 4
      %s113 = int_to_ptr.vmem [resolvable:$true] %s112
      %118 = dma.hbm_to_vmem [thread:$0]  %s8, 1024, %s113, [#allocation16], 64, 64, 4
    $region37: #{tpu_custom_call.1} parent=1 // pred_fallthru
      _
    // Predicated region
    $region38: #{tpu_custom_call.1} parent=1 // pred_check
      _
    $region39: #{tpu_custom_call.1} parent=1 // pred_check_branch
      %120 = sbr.rel (0) target = $region41
    $region40: #{tpu_custom_call.1} parent=1 // pred_region
      _
    $region41: #{tpu_custom_call.1} parent=1 // pred_fallthru
      _
    // Predicated region
    $region42: #{tpu_custom_call.1} parent=1 // pred_check
      _
    $region43: #{tpu_custom_call.1} parent=1 // pred_check_branch
      %122 = sbr.rel (0) target = $region45
    $region44: #{tpu_custom_call.1} parent=1 // pred_region
      %123 = dma.done [#allocation4], 256
    $region45: #{tpu_custom_call.1} parent=1 // pred_fallthru
      _
    // Predicated region
    $region46: #{tpu_custom_call.1} parent=1 // pred_check
      _
    $region47: #{tpu_custom_call.1} parent=1 // pred_check_branch
      %125 = sbr.rel (0) target = $region49
    $region48: #{tpu_custom_call.1} parent=1 // pred_region
      %126 = dma.done [#allocation7], 1024
    $region49: #{tpu_custom_call.1} parent=1 // pred_fallthru
      _
    // Predicated region
    $region50: #{tpu_custom_call.1} parent=1 // pred_check
      _
    $region51: #{tpu_custom_call.1} parent=1 // pred_check_branch
      %128 = sbr.rel (0) target = $region53
    $region52: #{tpu_custom_call.1} parent=1 // pred_region
      %129 = dma.done [#allocation7], 1024
    $region53: #{tpu_custom_call.1} parent=1 // pred_fallthru
      _
    // Predicated region
    $region54: #{tpu_custom_call.1} parent=1 // pred_check
      _
    $region55: #{tpu_custom_call.1} parent=1 // pred_check_branch
      %131 = sbr.rel (0) target = $region57
    $region56: #{tpu_custom_call.1} parent=1 // pred_region
      %132 = dma.done [#allocation10], 1024
    $region57: #{tpu_custom_call.1} parent=1 // pred_fallthru
      _
    // Predicated region
    $region58: #{tpu_custom_call.1} parent=1 // pred_check
      _
    $region59: #{tpu_custom_call.1} parent=1 // pred_check_branch
      %134 = sbr.rel (0) target = $region61
    $region60: #{tpu_custom_call.1} parent=1 // pred_region
      %135 = dma.done [#allocation10], 1024
    $region61: #{tpu_custom_call.1} parent=1 // pred_fallthru
      _
    // Predicated region
    $region62: #{tpu_custom_call.1} parent=1 // pred_check
      _
    $region63: #{tpu_custom_call.1} parent=1 // pred_check_branch
      %137 = sbr.rel (0) target = $region65
    $region64: #{tpu_custom_call.1} parent=1 // pred_region
      %138 = dma.done [#allocation13], 1024
    $region65: #{tpu_custom_call.1} parent=1 // pred_fallthru
      _
    // Predicated region
    $region66: #{tpu_custom_call.1} parent=1 // pred_check
      _
    $region67: #{tpu_custom_call.1} parent=1 // pred_check_branch
      %140 = sbr.rel (0) target = $region69
    $region68: #{tpu_custom_call.1} parent=1 // pred_region
      %141 = dma.done [#allocation13], 2048
    $region69: #{tpu_custom_call.1} parent=1 // pred_fallthru
      _
    // Predicated region
    $region70: #{tpu_custom_call.1} parent=1 // pred_check
      _
    $region71: #{tpu_custom_call.1} parent=1 // pred_check_branch
      %143 = sbr.rel (0) target = $region73
    $region72: #{tpu_custom_call.1} parent=1 // pred_region
      %144 = dma.done [#allocation16], 1024
    $region73: #{tpu_custom_call.1} parent=1 // pred_fallthru
      _
    %v146 = vld [vmem:[%s0] sm:$0xff]
    %v147 = vld [vmem:[%s0 + $0x8] sm:$0xff]
    %v148 = vld [vmem:[#allocation3] sm:$0xff]
    %v149 = vld [vmem:[#allocation3 + $0x8] sm:$0xff]
    %151 = vset.pattern.permute.xlu0 0
    %152 = vperm.xlu0 %151, %v146
    %v153 = vpop.permute.xlu0 %152
    %156 = vset.pattern.permute.xlu0 0
    %157 = vperm.xlu0 %156, %v147
    %v158 = vpop.permute.xlu0 %157
    %v160 = vmul.f32 %v148, %v153
    %v161 = vmul.f32 %v149, %v158
    %v162 = vpack.c.bf16 %v161, %v160
    %v163 = vld [vmem:[#allocation6] sm:$0xf]
    %v164 = vld [vmem:[#allocation6 + $0x4] sm:$0xf]
    %v165 = vld [vmem:[#allocation6 + $0x8] sm:$0xf]
    %v166 = vld [vmem:[#allocation6 + $0xc] sm:$0xf]
    %v167 = vld [vmem:[#allocation6 + $0x10] sm:$0xf]
    %v168 = vld [vmem:[#allocation6 + $0x14] sm:$0xf]
    %v169 = vld [vmem:[#allocation6 + $0x18] sm:$0xf]
    %v170 = vld [vmem:[#allocation6 + $0x1c] sm:$0xf]
    %v171 = vld [vmem:[#allocation6 + $0x20] sm:$0xf]
    %v172 = vld [vmem:[#allocation6 + $0x24] sm:$0xf]
    %v173 = vld [vmem:[#allocation6 + $0x28] sm:$0xf]
    %v174 = vld [vmem:[#allocation6 + $0x2c] sm:$0xf]
    %v175 = vld [vmem:[#allocation6 + $0x30] sm:$0xf]
    %v176 = vld [vmem:[#allocation6 + $0x34] sm:$0xf]
    %v177 = vld [vmem:[#allocation6 + $0x38] sm:$0xf]
    %v178 = vld [vmem:[#allocation6 + $0x3c] sm:$0xf]
    %v179 = vld [vmem:[%s9] ss:$0 sm:$0xff]
    %v196 = vunpack.c.l.b16 %v163
    %v197 = vunpack.c.l.b16 %v164
    %v198 = vunpack.c.l.b16 %v165
    %v199 = vunpack.c.l.b16 %v166
    %v200 = vunpack.c.l.b16 %v167
    %v201 = vunpack.c.l.b16 %v168
    %v202 = vunpack.c.l.b16 %v169
    %v203 = vunpack.c.l.b16 %v170
    %v204 = vunpack.c.l.b16 %v171
    %v205 = vunpack.c.l.b16 %v172
    %v206 = vunpack.c.l.b16 %v173
    %v207 = vunpack.c.l.b16 %v174
    %v208 = vunpack.c.l.b16 %v175
    %v209 = vunpack.c.l.b16 %v176
    %v210 = vunpack.c.l.b16 %v177
    %v211 = vunpack.c.l.b16 %v178
    %v212 = vpack.c.b16 %v197, %v196
    %v213 = vpack.c.b16 %v199, %v198
    %v214 = vpack.c.b16 %v201, %v200
    %v215 = vpack.c.b16 %v203, %v202
    %v216 = vpack.c.b16 %v205, %v204
    %v217 = vpack.c.b16 %v207, %v206
    %v218 = vpack.c.b16 %v209, %v208
    %v219 = vpack.c.b16 %v211, %v210
    %228 = vmatprep.subr.bf16.mxu0 0
    %229 = vmatpush1.bf16.msra.mxu0 %v219
    %230 = vmatprep.subr.bf16.mxu0 0
    %231 = vmatpush1.bf16.msra.mxu0 %v218
    %232 = vmatprep.subr.bf16.mxu0 0
    %233 = vmatpush1.bf16.msra.mxu0 %v217
    %234 = vmatprep.subr.bf16.mxu0 0
    %235 = vmatpush1.bf16.msra.mxu0 %v216
    %236 = vmatprep.subr.bf16.mxu0 0
    %237 = vmatpush1.bf16.msra.mxu0 %v215
    %238 = vmatprep.subr.bf16.mxu0 0
    %239 = vmatpush1.bf16.msra.mxu0 %v214
    %240 = vmatprep.subr.bf16.mxu0 0
    %241 = vmatpush1.bf16.msra.mxu0 %v213
    %242 = vmatprep.subr.bf16.mxu0 0
    %243 = vmatpush1.bf16.msra.mxu0 %v212
    %244 = vmatprep.subr.bf16.mxu0 0
    %245 = vmatpush2.bf16.msra.mxu0 0
    %246 = vmatprep.subr.bf16.mxu0 0
    %247 = vmatpush2.bf16.msra.mxu0 0
    %248 = vmatprep.subr.bf16.mxu0 0
    %249 = vmatpush2.bf16.msra.mxu0 0
    %250 = vmatprep.subr.bf16.mxu0 0
    %251 = vmatpush2.bf16.msra.mxu0 0
    %252 = vmatprep.subr.bf16.mxu0 0
    %253 = vmatpush2.bf16.msra.mxu0 0
    %254 = vmatprep.subr.bf16.mxu0 0
    %255 = vmatpush2.bf16.msra.mxu0 0
    %256 = vmatprep.subr.bf16.mxu0 0
    %257 = vmatpush2.bf16.msra.mxu0 0
    %258 = vmatprep.subr.bf16.mxu0 0
    %259 = vmatpush2.bf16.msra.mxu0 0
    %260 = vmatprep.mubr.bf16.mxu0 0
    %261 = vmatmul.mubr.bf16.gmra.mxu0 %v162
    %v262 = vpop.f32.mrf.mxu0
    %v263 = vadd.f32 %v179, %v262
    %v264 = vpop.f32.mrf.mxu0
    %v265 = vpop.f32.mrf.mxu0
    %v266 = vadd.f32 %v179, %v265
    %v267 = vpop.f32.mrf.mxu0
    %268 = vdwg.mxu0
    %vm269 = vcmp.gt.f32.partialorder %v263, 0.0
    %vm270 = vcmp.gt.f32.partialorder %v266, 0.0
    %v271 = vmul.f32 %v263, 0.2
    %v272 = vmul.f32 %v266, 0.2
    %v273 = vsel %vm269, %v263, %v271
    %v274 = vsel %vm270, %v266, %v272
    %v275 = vpack.c.bf16 %v274, %v273
    %v276 = vld [vmem:[#allocation8] sm:$0xf]
    %v277 = vld [vmem:[#allocation8 + $0x4] sm:$0xf]
    %v278 = vld [vmem:[#allocation8 + $0x8] sm:$0xf]
    %v279 = vld [vmem:[#allocation8 + $0xc] sm:$0xf]
    %v280 = vld [vmem:[#allocation8 + $0x10] sm:$0xf]
    %v281 = vld [vmem:[#allocation8 + $0x14] sm:$0xf]
    %v282 = vld [vmem:[#allocation8 + $0x18] sm:$0xf]
    %v283 = vld [vmem:[#allocation8 + $0x1c] sm:$0xf]
    %v284 = vld [vmem:[#allocation8 + $0x20] sm:$0xf]
    %v285 = vld [vmem:[#allocation8 + $0x24] sm:$0xf]
    %v286 = vld [vmem:[#allocation8 + $0x28] sm:$0xf]
    %v287 = vld [vmem:[#allocation8 + $0x2c] sm:$0xf]
    %v288 = vld [vmem:[#allocation8 + $0x30] sm:$0xf]
    %v289 = vld [vmem:[#allocation8 + $0x34] sm:$0xf]
    %v290 = vld [vmem:[#allocation8 + $0x38] sm:$0xf]
    %v291 = vld [vmem:[#allocation8 + $0x3c] sm:$0xf]
    %v292 = vld [vmem:[%s9 + $0x1] ss:$0 sm:$0xff]
    %v309 = vunpack.c.l.b16 %v276
    %v310 = vunpack.c.l.b16 %v277
    %v311 = vunpack.c.l.b16 %v278
    %v312 = vunpack.c.l.b16 %v279
    %v313 = vunpack.c.l.b16 %v280
    %v314 = vunpack.c.l.b16 %v281
    %v315 = vunpack.c.l.b16 %v282
    %v316 = vunpack.c.l.b16 %v283
    %v317 = vunpack.c.l.b16 %v284
    %v318 = vunpack.c.l.b16 %v285
    %v319 = vunpack.c.l.b16 %v286
    %v320 = vunpack.c.l.b16 %v287
    %v321 = vunpack.c.l.b16 %v288
    %v322 = vunpack.c.l.b16 %v289
    %v323 = vunpack.c.l.b16 %v290
    %v324 = vunpack.c.l.b16 %v291
    %v325 = vpack.c.b16 %v310, %v309
    %v326 = vpack.c.b16 %v312, %v311
    %v327 = vpack.c.b16 %v314, %v313
    %v328 = vpack.c.b16 %v316, %v315
    %v329 = vpack.c.b16 %v318, %v317
    %v330 = vpack.c.b16 %v320, %v319
    %v331 = vpack.c.b16 %v322, %v321
    %v332 = vpack.c.b16 %v324, %v323
    %341 = vmatprep.subr.bf16.mxu0 0
    %342 = vmatpush1.bf16.msra.mxu0 %v332
    %343 = vmatprep.subr.bf16.mxu0 0
    %344 = vmatpush1.bf16.msra.mxu0 %v331
    %345 = vmatprep.subr.bf16.mxu0 0
    %346 = vmatpush1.bf16.msra.mxu0 %v330
    %347 = vmatprep.subr.bf16.mxu0 0
    %348 = vmatpush1.bf16.msra.mxu0 %v329
    %349 = vmatprep.subr.bf16.mxu0 0
    %350 = vmatpush1.bf16.msra.mxu0 %v328
    %351 = vmatprep.subr.bf16.mxu0 0
    %352 = vmatpush1.bf16.msra.mxu0 %v327
    %353 = vmatprep.subr.bf16.mxu0 0
    %354 = vmatpush1.bf16.msra.mxu0 %v326
    %355 = vmatprep.subr.bf16.mxu0 0
    %356 = vmatpush1.bf16.msra.mxu0 %v325
    %357 = vmatprep.subr.bf16.mxu0 0
    %358 = vmatpush2.bf16.msra.mxu0 0
    %359 = vmatprep.subr.bf16.mxu0 0
    %360 = vmatpush2.bf16.msra.mxu0 0
    %361 = vmatprep.subr.bf16.mxu0 0
    %362 = vmatpush2.bf16.msra.mxu0 0
    %363 = vmatprep.subr.bf16.mxu0 0
    %364 = vmatpush2.bf16.msra.mxu0 0
    %365 = vmatprep.subr.bf16.mxu0 0
    %366 = vmatpush2.bf16.msra.mxu0 0
    %367 = vmatprep.subr.bf16.mxu0 0
    %368 = vmatpush2.bf16.msra.mxu0 0
    %369 = vmatprep.subr.bf16.mxu0 0
    %370 = vmatpush2.bf16.msra.mxu0 0
    %371 = vmatprep.subr.bf16.mxu0 0
    %372 = vmatpush2.bf16.msra.mxu0 0
    %373 = vmatprep.mubr.bf16.mxu0 0
    %374 = vmatmul.mubr.bf16.gmra.mxu0 %v275
    %v375 = vpop.f32.mrf.mxu0
    %v376 = vadd.f32 %v292, %v375
    %v377 = vpop.f32.mrf.mxu0
    %v378 = vpop.f32.mrf.mxu0
    %v379 = vadd.f32 %v292, %v378
    %v380 = vpop.f32.mrf.mxu0
    %381 = vdwg.mxu0
    %vm382 = vcmp.gt.f32.partialorder %v376, 0.0
    %vm383 = vcmp.gt.f32.partialorder %v379, 0.0
    %v384 = vmul.f32 %v376, 0.2
    %v385 = vmul.f32 %v379, 0.2
    %v386 = vsel %vm382, %v376, %v384
    %v387 = vsel %vm383, %v379, %v385
    %v388 = vld [vmem:[%s9 + $0x2] ss:$0 sm:$0xff]
    %v389 = vld [vmem:[%s9 + $0x3] ss:$0 sm:$0xff]
    %v390 = vadd.f32 %v386, %v387
    %v391 = vrot.slane %v390, 4
    %v392 = vadd.f32 %v390, %v391
    %v393 = vrot.slane %v392, 2
    %v394 = vadd.f32 %v392, %v393
    %v395 = vrot.slane %v394, 1
    %v396 = vadd.f32 %v394, %v395
    %v397 = vrcp.pop 16.0
    %v398 = vmul.f32 %v396, %v397
    %v399 = vsub.f32 %v386, %v398
    %v400 = vsub.f32 %v387, %v398
    %v401 = vmul.f32 %v399, %v399
    %v402 = vmul.f32 %v400, %v400
    %v403 = vadd.f32 %v401, %v402
    %v404 = vrot.slane %v403, 4
    %v405 = vadd.f32 %v403, %v404
    %v406 = vrot.slane %v405, 2
    %v407 = vadd.f32 %v405, %v406
    %v408 = vrot.slane %v407, 1
    %v409 = vadd.f32 %v407, %v408
    %v410 = vmul.f32 %v409, %v397
    %v411 = vadd.f32 %v410, 1e-05
    %v412 = vrsqrt.pop %v411
    %v413 = vmul.f32 %v399, %v412
    %v414 = vmul.f32 %v400, %v412
    %v415 = vmul.f32 %v413, %v388
    %v416 = vmul.f32 %v414, %v388
    %v417 = vadd.f32 %v415, %v389
    %v418 = vadd.f32 %v416, %v389
    %v419 = vmul.f32 %v417, %v153
    %v420 = vmul.f32 %v418, %v158
    %v421 = vpack.c.bf16 %v420, %v419
    %v422 = vld [vmem:[#allocation9] sm:$0xf]
    %v423 = vld [vmem:[#allocation9 + $0x4] sm:$0xf]
    %v424 = vld [vmem:[#allocation9 + $0x8] sm:$0xf]
    %v425 = vld [vmem:[#allocation9 + $0xc] sm:$0xf]
    %v426 = vld [vmem:[#allocation9 + $0x10] sm:$0xf]
    %v427 = vld [vmem:[#allocation9 + $0x14] sm:$0xf]
    %v428 = vld [vmem:[#allocation9 + $0x18] sm:$0xf]
    %v429 = vld [vmem:[#allocation9 + $0x1c] sm:$0xf]
    %v430 = vld [vmem:[#allocation9 + $0x20] sm:$0xf]
    %v431 = vld [vmem:[#allocation9 + $0x24] sm:$0xf]
    %v432 = vld [vmem:[#allocation9 + $0x28] sm:$0xf]
    %v433 = vld [vmem:[#allocation9 + $0x2c] sm:$0xf]
    %v434 = vld [vmem:[#allocation9 + $0x30] sm:$0xf]
    %v435 = vld [vmem:[#allocation9 + $0x34] sm:$0xf]
    %v436 = vld [vmem:[#allocation9 + $0x38] sm:$0xf]
    %v437 = vld [vmem:[#allocation9 + $0x3c] sm:$0xf]
    %v438 = vld [vmem:[%s9 + $0x4] ss:$0 sm:$0xff]
    %v455 = vunpack.c.l.b16 %v422
    %v456 = vunpack.c.l.b16 %v423
    %v457 = vunpack.c.l.b16 %v424
    %v458 = vunpack.c.l.b16 %v425
    %v459 = vunpack.c.l.b16 %v426
    %v460 = vunpack.c.l.b16 %v427
    %v461 = vunpack.c.l.b16 %v428
    %v462 = vunpack.c.l.b16 %v429
    %v463 = vunpack.c.l.b16 %v430
    %v464 = vunpack.c.l.b16 %v431
    %v465 = vunpack.c.l.b16 %v432
    %v466 = vunpack.c.l.b16 %v433
    %v467 = vunpack.c.l.b16 %v434
    %v468 = vunpack.c.l.b16 %v435
    %v469 = vunpack.c.l.b16 %v436
    %v470 = vunpack.c.l.b16 %v437
    %v471 = vpack.c.b16 %v456, %v455
    %v472 = vpack.c.b16 %v458, %v457
    %v473 = vpack.c.b16 %v460, %v459
    %v474 = vpack.c.b16 %v462, %v461
    %v475 = vpack.c.b16 %v464, %v463
    %v476 = vpack.c.b16 %v466, %v465
    %v477 = vpack.c.b16 %v468, %v467
    %v478 = vpack.c.b16 %v470, %v469
    %487 = vmatprep.subr.bf16.mxu0 0
    %488 = vmatpush1.bf16.msra.mxu0 %v478
    %489 = vmatprep.subr.bf16.mxu0 0
    %490 = vmatpush1.bf16.msra.mxu0 %v477
    %491 = vmatprep.subr.bf16.mxu0 0
    %492 = vmatpush1.bf16.msra.mxu0 %v476
    %493 = vmatprep.subr.bf16.mxu0 0
    %494 = vmatpush1.bf16.msra.mxu0 %v475
    %495 = vmatprep.subr.bf16.mxu0 0
    %496 = vmatpush1.bf16.msra.mxu0 %v474
    %497 = vmatprep.subr.bf16.mxu0 0
    %498 = vmatpush1.bf16.msra.mxu0 %v473
    %499 = vmatprep.subr.bf16.mxu0 0
    %500 = vmatpush1.bf16.msra.mxu0 %v472
    %501 = vmatprep.subr.bf16.mxu0 0
    %502 = vmatpush1.bf16.msra.mxu0 %v471
    %503 = vmatprep.subr.bf16.mxu0 0
    %504 = vmatpush2.bf16.msra.mxu0 0
    %505 = vmatprep.subr.bf16.mxu0 0
    %506 = vmatpush2.bf16.msra.mxu0 0
    %507 = vmatprep.subr.bf16.mxu0 0
    %508 = vmatpush2.bf16.msra.mxu0 0
    %509 = vmatprep.subr.bf16.mxu0 0
    %510 = vmatpush2.bf16.msra.mxu0 0
    %511 = vmatprep.subr.bf16.mxu0 0
    %512 = vmatpush2.bf16.msra.mxu0 0
    %513 = vmatprep.subr.bf16.mxu0 0
    %514 = vmatpush2.bf16.msra.mxu0 0
    %515 = vmatprep.subr.bf16.mxu0 0
    %516 = vmatpush2.bf16.msra.mxu0 0
    %517 = vmatprep.subr.bf16.mxu0 0
    %518 = vmatpush2.bf16.msra.mxu0 0
    %519 = vmatprep.mubr.bf16.mxu0 0
    %520 = vmatmul.mubr.bf16.gmra.mxu0 %v421
    %v521 = vpop.f32.mrf.mxu0
    %v522 = vadd.f32 %v438, %v521
    %v523 = vpop.f32.mrf.mxu0
    %v524 = vpop.f32.mrf.mxu0
    %v525 = vadd.f32 %v438, %v524
    %v526 = vpop.f32.mrf.mxu0
    %527 = vdwg.mxu0
    %vm528 = vcmp.gt.f32.partialorder %v522, 0.0
    %vm529 = vcmp.gt.f32.partialorder %v525, 0.0
    %v530 = vmul.f32 %v522, 0.2
    %v531 = vmul.f32 %v525, 0.2
    %v532 = vsel %vm528, %v522, %v530
    %v533 = vsel %vm529, %v525, %v531
    %v534 = vpack.c.bf16 %v533, %v532
    %v535 = vld [vmem:[#allocation11] sm:$0xf]
    %v536 = vld [vmem:[#allocation11 + $0x4] sm:$0xf]
    %v537 = vld [vmem:[#allocation11 + $0x8] sm:$0xf]
    %v538 = vld [vmem:[#allocation11 + $0xc] sm:$0xf]
    %v539 = vld [vmem:[#allocation11 + $0x10] sm:$0xf]
    %v540 = vld [vmem:[#allocation11 + $0x14] sm:$0xf]
    %v541 = vld [vmem:[#allocation11 + $0x18] sm:$0xf]
    %v542 = vld [vmem:[#allocation11 + $0x1c] sm:$0xf]
    %v543 = vld [vmem:[#allocation11 + $0x20] sm:$0xf]
    %v544 = vld [vmem:[#allocation11 + $0x24] sm:$0xf]
    %v545 = vld [vmem:[#allocation11 + $0x28] sm:$0xf]
    %v546 = vld [vmem:[#allocation11 + $0x2c] sm:$0xf]
    %v547 = vld [vmem:[#allocation11 + $0x30] sm:$0xf]
    %v548 = vld [vmem:[#allocation11 + $0x34] sm:$0xf]
    %v549 = vld [vmem:[#allocation11 + $0x38] sm:$0xf]
    %v550 = vld [vmem:[#allocation11 + $0x3c] sm:$0xf]
    %v551 = vld [vmem:[%s9 + $0x5] ss:$0 sm:$0xff]
    %v568 = vunpack.c.l.b16 %v535
    %v569 = vunpack.c.l.b16 %v536
    %v570 = vunpack.c.l.b16 %v537
    %v571 = vunpack.c.l.b16 %v538
    %v572 = vunpack.c.l.b16 %v539
    %v573 = vunpack.c.l.b16 %v540
    %v574 = vunpack.c.l.b16 %v541
    %v575 = vunpack.c.l.b16 %v542
    %v576 = vunpack.c.l.b16 %v543
    %v577 = vunpack.c.l.b16 %v544
    %v578 = vunpack.c.l.b16 %v545
    %v579 = vunpack.c.l.b16 %v546
    %v580 = vunpack.c.l.b16 %v547
    %v581 = vunpack.c.l.b16 %v548
    %v582 = vunpack.c.l.b16 %v549
    %v583 = vunpack.c.l.b16 %v550
    %v584 = vpack.c.b16 %v569, %v568
    %v585 = vpack.c.b16 %v571, %v570
    %v586 = vpack.c.b16 %v573, %v572
    %v587 = vpack.c.b16 %v575, %v574
    %v588 = vpack.c.b16 %v577, %v576
    %v589 = vpack.c.b16 %v579, %v578
    %v590 = vpack.c.b16 %v581, %v580
    %v591 = vpack.c.b16 %v583, %v582
    %600 = vmatprep.subr.bf16.mxu0 0
    %601 = vmatpush1.bf16.msra.mxu0 %v591
    %602 = vmatprep.subr.bf16.mxu0 0
    %603 = vmatpush1.bf16.msra.mxu0 %v590
    %604 = vmatprep.subr.bf16.mxu0 0
    %605 = vmatpush1.bf16.msra.mxu0 %v589
    %606 = vmatprep.subr.bf16.mxu0 0
    %607 = vmatpush1.bf16.msra.mxu0 %v588
    %608 = vmatprep.subr.bf16.mxu0 0
    %609 = vmatpush1.bf16.msra.mxu0 %v587
    %610 = vmatprep.subr.bf16.mxu0 0
    %611 = vmatpush1.bf16.msra.mxu0 %v586
    %612 = vmatprep.subr.bf16.mxu0 0
    %613 = vmatpush1.bf16.msra.mxu0 %v585
    %614 = vmatprep.subr.bf16.mxu0 0
    %615 = vmatpush1.bf16.msra.mxu0 %v584
    %616 = vmatprep.subr.bf16.mxu0 0
    %617 = vmatpush2.bf16.msra.mxu0 0
    %618 = vmatprep.subr.bf16.mxu0 0
    %619 = vmatpush2.bf16.msra.mxu0 0
    %620 = vmatprep.subr.bf16.mxu0 0
    %621 = vmatpush2.bf16.msra.mxu0 0
    %622 = vmatprep.subr.bf16.mxu0 0
    %623 = vmatpush2.bf16.msra.mxu0 0
    %624 = vmatprep.subr.bf16.mxu0 0
    %625 = vmatpush2.bf16.msra.mxu0 0
    %626 = vmatprep.subr.bf16.mxu0 0
    %627 = vmatpush2.bf16.msra.mxu0 0
    %628 = vmatprep.subr.bf16.mxu0 0
    %629 = vmatpush2.bf16.msra.mxu0 0
    %630 = vmatprep.subr.bf16.mxu0 0
    %631 = vmatpush2.bf16.msra.mxu0 0
    %632 = vmatprep.mubr.bf16.mxu0 0
    %633 = vmatmul.mubr.bf16.gmra.mxu0 %v534
    %v634 = vpop.f32.mrf.mxu0
    %v635 = vadd.f32 %v551, %v634
    %v636 = vpop.f32.mrf.mxu0
    %v637 = vpop.f32.mrf.mxu0
    %v638 = vadd.f32 %v551, %v637
    %v639 = vpop.f32.mrf.mxu0
    %640 = vdwg.mxu0
    %vm641 = vcmp.gt.f32.partialorder %v635, 0.0
    %vm642 = vcmp.gt.f32.partialorder %v638, 0.0
    %v643 = vmul.f32 %v635, 0.2
    %v644 = vmul.f32 %v638, 0.2
    %v645 = vsel %vm641, %v635, %v643
    %v646 = vsel %vm642, %v638, %v644
    %v647 = vld [vmem:[%s9 + $0x6] ss:$0 sm:$0xff]
    %v648 = vld [vmem:[%s9 + $0x7] ss:$0 sm:$0xff]
    %v649 = vadd.f32 %v645, %v646
    %v650 = vrot.slane %v649, 4
    %v651 = vadd.f32 %v649, %v650
    %v652 = vrot.slane %v651, 2
    %v653 = vadd.f32 %v651, %v652
    %v654 = vrot.slane %v653, 1
    %v655 = vadd.f32 %v653, %v654
    %v656 = vmul.f32 %v655, %v397
    %v657 = vsub.f32 %v645, %v656
    %v658 = vsub.f32 %v646, %v656
    %v659 = vmul.f32 %v657, %v657
    %v660 = vmul.f32 %v658, %v658
    %v661 = vadd.f32 %v659, %v660
    %v662 = vrot.slane %v661, 4
    %v663 = vadd.f32 %v661, %v662
    %v664 = vrot.slane %v663, 2
    %v665 = vadd.f32 %v663, %v664
    %v666 = vrot.slane %v665, 1
    %v667 = vadd.f32 %v665, %v666
    %v668 = vmul.f32 %v667, %v397
    %v669 = vadd.f32 %v668, 1e-05
    %v670 = vrsqrt.pop %v669
    %v671 = vmul.f32 %v657, %v670
    %v672 = vmul.f32 %v658, %v670
    %v673 = vmul.f32 %v671, %v647
    %v674 = vmul.f32 %v672, %v647
    %v675 = vadd.f32 %v673, %v648
    %v676 = vadd.f32 %v674, %v648
    %677 = vst [vmem:[#allocation2] sm:$0xff] %v675
    %678 = vst [vmem:[#allocation2 + $0x8] sm:$0xff] %v676
    loop: start=0, step=1, limit=8
    $region74: #{tpu_custom_call.1} parent=1 // loop_pre_header
      _
    $region75: #{tpu_custom_call.1} parent=1 // loop_header
      %s680 = sphi 0, %s684
      %p681 = scmp.ge.s32.totalorder %s680, 8
      %v685 = vphi 0.0, %v751
      %v686 = vphi 0.0, %v752
    $region76: #{tpu_custom_call.1} parent=1 // loop_header_branch
      %683 = sbr.rel (%p681) target = $region80
    $region77: #{tpu_custom_call.1} parent=1 // loop_body
      %s687 = smul.u32 %s680, 2
      %s688 = scalar_lea.vmem [#allocation2], %s687
      %v689 = vld [vmem:[%s688] sm:$0x3]
      %v690 = vpack.c.bf16 %v689, %v689
      %s691 = smul.addr %s687, 4
      %s692 = scalar_lea.vmem [#allocation12], %s691
      %v693 = vld [vmem:[%s692] sm:$0xff]
      %v695 = vunpack.c.l.b16 %v693
      %v696 = vunpack.c.h.b16 %v693
      %v697 = vpack.c.b16 %v695, %v695
      %v698 = vpack.c.b16 %v696, %v696
      %vm699 = vcmask 64512
      %v701 = vsel %vm699, %v690, 0
      %vm703 = vcmask 1043456
      %v705 = vsel %vm703, %v697, 0
      %v708 = vsel %vm703, %v698, 0
      %710 = vmatprep.subr.bf16.mxu0 0
      %711 = vmatpush1.bf16.msra.mxu0 0
      %712 = vmatprep.subr.bf16.mxu0 0
      %713 = vmatpush1.bf16.msra.mxu0 0
      %714 = vmatprep.subr.bf16.mxu0 0
      %715 = vmatpush1.bf16.msra.mxu0 0
      %716 = vmatprep.subr.bf16.mxu0 0
      %717 = vmatpush1.bf16.msra.mxu0 0
      %718 = vmatprep.subr.bf16.mxu0 0
      %719 = vmatpush1.bf16.msra.mxu0 0
      %720 = vmatprep.subr.bf16.mxu0 0
      %721 = vmatpush1.bf16.msra.mxu0 0
      %722 = vmatprep.subr.bf16.mxu0 0
      %723 = vmatpush1.bf16.msra.mxu0 0
      %724 = vmatprep.subr.bf16.mxu0 %v708
      %725 = vmatpush1.bf16.msra.mxu0 %v705
      %726 = vmatprep.subr.bf16.mxu0 0
      %727 = vmatpush2.bf16.msra.mxu0 0
      %728 = vmatprep.subr.bf16.mxu0 0
      %729 = vmatpush2.bf16.msra.mxu0 0
      %730 = vmatprep.subr.bf16.mxu0 0
      %731 = vmatpush2.bf16.msra.mxu0 0
      %732 = vmatprep.subr.bf16.mxu0 0
      %733 = vmatpush2.bf16.msra.mxu0 0
      %734 = vmatprep.subr.bf16.mxu0 0
      %735 = vmatpush2.bf16.msra.mxu0 0
      %736 = vmatprep.subr.bf16.mxu0 0
      %737 = vmatpush2.bf16.msra.mxu0 0
      %738 = vmatprep.subr.bf16.mxu0 0
      %739 = vmatpush2.bf16.msra.mxu0 0
      %740 = vmatprep.subr.bf16.mxu0 0
      %741 = vmatpush2.bf16.msra.mxu0 0
      %742 = vmatprep.mubr.bf16.mxu0 0
      %743 = vmatmul.mubr.bf16.gmra.mxu0 %v701
      %v744 = vpop.f32.mrf.mxu0
      %v745 = vadd.f32 0.0, %v744
      %v746 = vpop.f32.mrf.mxu0
      %v747 = vadd.f32 0.0, %v746
      %v748 = vpop.f32.mrf.mxu0
      %v749 = vpop.f32.mrf.mxu0
      %750 = vdwg.mxu0
      %v751 = vadd.f32 %v685, %v745
      %v752 = vadd.f32 %v686, %v747
    $region78: #{tpu_custom_call.1} parent=1 // loop_footer
      %s684 = sadd.s32 1, %s680
    $region79: #{tpu_custom_call.1} parent=1 // loop_footer_branch
      %679 = sbr.rel target = $region75
    $region80: #{tpu_custom_call.1} parent=1 // loop_exit
      _
    %s753 = scalar_lea.vmem %s9, 16
    %v754 = vld [vmem:[%s753] ss:$8 sm:$0x3]
    %v756 = vlaneseq
    %v757 = vshrl.u32 %v756, 7
    %v758 = vsub.s32 0, %v757
    %v759 = vrot.slane %v754, %v758
    %v760 = vlaneseq
    %v761 = vshrl.u32 %v760, 7
    %v762 = vsub.s32 1, %v761
    %v763 = vrot.slane %v754, %v762
    %v766 = vadd.f32 %v685, %v759
    %v767 = vadd.f32 %v686, %v763
    %vm768 = vcmp.gt.f32.partialorder %v766, 0.0
    %vm769 = vcmp.gt.f32.partialorder %v767, 0.0
    %v770 = vmul.f32 %v766, 0.2
    %v771 = vmul.f32 %v767, 0.2
    %v772 = vsel %vm768, %v766, %v770
    %v773 = vsel %vm769, %v767, %v771
    %v774 = vpack.c.bf16 %v772, %v772
    %v775 = vpack.c.bf16 %v773, %v773
    %v776 = vld [vmem:[#allocation14] sm:$0xf]
    %v777 = vld [vmem:[#allocation14 + $0x4] sm:$0xf]
    %v778 = vld [vmem:[#allocation14 + $0x8] sm:$0xf]
    %v779 = vld [vmem:[#allocation14 + $0xc] sm:$0xf]
    %v780 = vld [vmem:[#allocation14 + $0x10] sm:$0xf]
    %v781 = vld [vmem:[#allocation14 + $0x14] sm:$0xf]
    %v782 = vld [vmem:[#allocation14 + $0x18] sm:$0xf]
    %v783 = vld [vmem:[#allocation14 + $0x1c] sm:$0xf]
    %v784 = vld [vmem:[#allocation14 + $0x20] sm:$0xf]
    %v785 = vld [vmem:[#allocation14 + $0x24] sm:$0xf]
    %v786 = vld [vmem:[#allocation14 + $0x28] sm:$0xf]
    %v787 = vld [vmem:[#allocation14 + $0x2c] sm:$0xf]
    %v788 = vld [vmem:[#allocation14 + $0x30] sm:$0xf]
    %v789 = vld [vmem:[#allocation14 + $0x34] sm:$0xf]
    %v790 = vld [vmem:[#allocation14 + $0x38] sm:$0xf]
    %v791 = vld [vmem:[#allocation14 + $0x3c] sm:$0xf]
    %v792 = vld [vmem:[#allocation14 + $0x40] sm:$0xf]
    %v793 = vld [vmem:[#allocation14 + $0x44] sm:$0xf]
    %v794 = vld [vmem:[#allocation14 + $0x48] sm:$0xf]
    %v795 = vld [vmem:[#allocation14 + $0x4c] sm:$0xf]
    %v796 = vld [vmem:[#allocation14 + $0x50] sm:$0xf]
    %v797 = vld [vmem:[#allocation14 + $0x54] sm:$0xf]
    %v798 = vld [vmem:[#allocation14 + $0x58] sm:$0xf]
    %v799 = vld [vmem:[#allocation14 + $0x5c] sm:$0xf]
    %v800 = vld [vmem:[#allocation14 + $0x60] sm:$0xf]
    %v801 = vld [vmem:[#allocation14 + $0x64] sm:$0xf]
    %v802 = vld [vmem:[#allocation14 + $0x68] sm:$0xf]
    %v803 = vld [vmem:[#allocation14 + $0x6c] sm:$0xf]
    %v804 = vld [vmem:[#allocation14 + $0x70] sm:$0xf]
    %v805 = vld [vmem:[#allocation14 + $0x74] sm:$0xf]
    %v806 = vld [vmem:[#allocation14 + $0x78] sm:$0xf]
    %v807 = vld [vmem:[#allocation14 + $0x7c] sm:$0xf]
    %v808 = vld [vmem:[%s9 + $0x11] ss:$0 sm:$0xff]
    %v841 = vunpack.c.l.b16 %v776
    %v842 = vunpack.c.l.b16 %v777
    %v843 = vunpack.c.l.b16 %v778
    %v844 = vunpack.c.l.b16 %v779
    %v845 = vunpack.c.l.b16 %v780
    %v846 = vunpack.c.l.b16 %v781
    %v847 = vunpack.c.l.b16 %v782
    %v848 = vunpack.c.l.b16 %v783
    %v849 = vunpack.c.l.b16 %v784
    %v850 = vunpack.c.l.b16 %v785
    %v851 = vunpack.c.l.b16 %v786
    %v852 = vunpack.c.l.b16 %v787
    %v853 = vunpack.c.l.b16 %v788
    %v854 = vunpack.c.l.b16 %v789
    %v855 = vunpack.c.l.b16 %v790
    %v856 = vunpack.c.l.b16 %v791
    %v857 = vunpack.c.l.b16 %v792
    %v858 = vunpack.c.l.b16 %v793
    %v859 = vunpack.c.l.b16 %v794
    %v860 = vunpack.c.l.b16 %v795
    %v861 = vunpack.c.l.b16 %v796
    %v862 = vunpack.c.l.b16 %v797
    %v863 = vunpack.c.l.b16 %v798
    %v864 = vunpack.c.l.b16 %v799
    %v865 = vunpack.c.l.b16 %v800
    %v866 = vunpack.c.l.b16 %v801
    %v867 = vunpack.c.l.b16 %v802
    %v868 = vunpack.c.l.b16 %v803
    %v869 = vunpack.c.l.b16 %v804
    %v870 = vunpack.c.l.b16 %v805
    %v871 = vunpack.c.l.b16 %v806
    %v872 = vunpack.c.l.b16 %v807
    %v873 = vpack.c.b16 %v842, %v841
    %v874 = vpack.c.b16 %v844, %v843
    %v875 = vpack.c.b16 %v846, %v845
    %v876 = vpack.c.b16 %v848, %v847
    %v877 = vpack.c.b16 %v850, %v849
    %v878 = vpack.c.b16 %v852, %v851
    %v879 = vpack.c.b16 %v854, %v853
    %v880 = vpack.c.b16 %v856, %v855
    %v881 = vpack.c.b16 %v858, %v857
    %v882 = vpack.c.b16 %v860, %v859
    %v883 = vpack.c.b16 %v862, %v861
    %v884 = vpack.c.b16 %v864, %v863
    %v885 = vpack.c.b16 %v866, %v865
    %v886 = vpack.c.b16 %v868, %v867
    %v887 = vpack.c.b16 %v870, %v869
    %v888 = vpack.c.b16 %v872, %v871
    %905 = vmatprep.subr.bf16.mxu0 0
    %906 = vmatpush1.bf16.msra.mxu0 %v880
    %907 = vmatprep.subr.bf16.mxu0 0
    %908 = vmatpush1.bf16.msra.mxu0 %v879
    %909 = vmatprep.subr.bf16.mxu0 0
    %910 = vmatpush1.bf16.msra.mxu0 %v878
    %911 = vmatprep.subr.bf16.mxu0 0
    %912 = vmatpush1.bf16.msra.mxu0 %v877
    %913 = vmatprep.subr.bf16.mxu0 0
    %914 = vmatpush1.bf16.msra.mxu0 %v876
    %915 = vmatprep.subr.bf16.mxu0 0
    %916 = vmatpush1.bf16.msra.mxu0 %v875
    %917 = vmatprep.subr.bf16.mxu0 0
    %918 = vmatpush1.bf16.msra.mxu0 %v874
    %919 = vmatprep.subr.bf16.mxu0 0
    %920 = vmatpush1.bf16.msra.mxu0 %v873
    %921 = vmatprep.subr.bf16.mxu0 0
    %922 = vmatpush2.bf16.msra.mxu0 %v888
    %923 = vmatprep.subr.bf16.mxu0 0
    %924 = vmatpush2.bf16.msra.mxu0 %v887
    %925 = vmatprep.subr.bf16.mxu0 0
    %926 = vmatpush2.bf16.msra.mxu0 %v886
    %927 = vmatprep.subr.bf16.mxu0 0
    %928 = vmatpush2.bf16.msra.mxu0 %v885
    %929 = vmatprep.subr.bf16.mxu0 0
    %930 = vmatpush2.bf16.msra.mxu0 %v884
    %931 = vmatprep.subr.bf16.mxu0 0
    %932 = vmatpush2.bf16.msra.mxu0 %v883
    %933 = vmatprep.subr.bf16.mxu0 0
    %934 = vmatpush2.bf16.msra.mxu0 %v882
    %935 = vmatprep.subr.bf16.mxu0 0
    %936 = vmatpush2.bf16.msra.mxu0 %v881
    %937 = vmatprep.mubr.bf16.mxu0 %v775
    %938 = vmatmul.mubr.bf16.gmra.mxu0 %v774
    %v939 = vpop.f32.mrf.mxu0
    %v940 = vadd.f32 %v808, %v939
    %v941 = vpop.f32.mrf.mxu0
    %v942 = vpop.f32.mrf.mxu0
    %v943 = vpop.f32.mrf.mxu0
    %944 = vdwg.mxu0
    %vm945 = vcmp.gt.f32.partialorder %v940, 0.0
    %v946 = vmul.f32 %v940, 0.2
    %v947 = vsel %vm945, %v940, %v946
    %v948 = vpack.c.bf16 %v947, %v947
    %v949 = vld [vmem:[#allocation15] sm:$0xf]
    %v950 = vld [vmem:[#allocation15 + $0x4] sm:$0xf]
    %v951 = vld [vmem:[#allocation15 + $0x8] sm:$0xf]
    %v952 = vld [vmem:[#allocation15 + $0xc] sm:$0xf]
    %v953 = vld [vmem:[#allocation15 + $0x10] sm:$0xf]
    %v954 = vld [vmem:[#allocation15 + $0x14] sm:$0xf]
    %v955 = vld [vmem:[#allocation15 + $0x18] sm:$0xf]
    %v956 = vld [vmem:[#allocation15 + $0x1c] sm:$0xf]
    %v957 = vld [vmem:[#allocation15 + $0x20] sm:$0xf]
    %v958 = vld [vmem:[#allocation15 + $0x24] sm:$0xf]
    %v959 = vld [vmem:[#allocation15 + $0x28] sm:$0xf]
    %v960 = vld [vmem:[#allocation15 + $0x2c] sm:$0xf]
    %v961 = vld [vmem:[#allocation15 + $0x30] sm:$0xf]
    %v962 = vld [vmem:[#allocation15 + $0x34] sm:$0xf]
    %v963 = vld [vmem:[#allocation15 + $0x38] sm:$0xf]
    %v964 = vld [vmem:[#allocation15 + $0x3c] sm:$0xf]
    %v965 = vld [vmem:[%s9 + $0x12] ss:$0 sm:$0xff]
    %v982 = vunpack.c.l.b16 %v949
    %v983 = vunpack.c.l.b16 %v950
    %v984 = vunpack.c.l.b16 %v951
    %v985 = vunpack.c.l.b16 %v952
    %v986 = vunpack.c.l.b16 %v953
    %v987 = vunpack.c.l.b16 %v954
    %v988 = vunpack.c.l.b16 %v955
    %v989 = vunpack.c.l.b16 %v956
    %v990 = vunpack.c.l.b16 %v957
    %v991 = vunpack.c.l.b16 %v958
    %v992 = vunpack.c.l.b16 %v959
    %v993 = vunpack.c.l.b16 %v960
    %v994 = vunpack.c.l.b16 %v961
    %v995 = vunpack.c.l.b16 %v962
    %v996 = vunpack.c.l.b16 %v963
    %v997 = vunpack.c.l.b16 %v964
    %v998 = vpack.c.b16 %v983, %v982
    %v999 = vpack.c.b16 %v985, %v984
    %v1000 = vpack.c.b16 %v987, %v986
    %v1001 = vpack.c.b16 %v989, %v988
    %v1002 = vpack.c.b16 %v991, %v990
    %v1003 = vpack.c.b16 %v993, %v992
    %v1004 = vpack.c.b16 %v995, %v994
    %v1005 = vpack.c.b16 %v997, %v996
    %1014 = vmatprep.subr.bf16.mxu0 0
    %1015 = vmatpush1.bf16.msra.mxu0 %v1005
    %1016 = vmatprep.subr.bf16.mxu0 0
    %1017 = vmatpush1.bf16.msra.mxu0 %v1004
    %1018 = vmatprep.subr.bf16.mxu0 0
    %1019 = vmatpush1.bf16.msra.mxu0 %v1003
    %1020 = vmatprep.subr.bf16.mxu0 0
    %1021 = vmatpush1.bf16.msra.mxu0 %v1002
    %1022 = vmatprep.subr.bf16.mxu0 0
    %1023 = vmatpush1.bf16.msra.mxu0 %v1001
    %1024 = vmatprep.subr.bf16.mxu0 0
    %1025 = vmatpush1.bf16.msra.mxu0 %v1000
    %1026 = vmatprep.subr.bf16.mxu0 0
    %1027 = vmatpush1.bf16.msra.mxu0 %v999
    %1028 = vmatprep.subr.bf16.mxu0 0
    %1029 = vmatpush1.bf16.msra.mxu0 %v998
    %1030 = vmatprep.subr.bf16.mxu0 0
    %1031 = vmatpush2.bf16.msra.mxu0 0
    %1032 = vmatprep.subr.bf16.mxu0 0
    %1033 = vmatpush2.bf16.msra.mxu0 0
    %1034 = vmatprep.subr.bf16.mxu0 0
    %1035 = vmatpush2.bf16.msra.mxu0 0
    %1036 = vmatprep.subr.bf16.mxu0 0
    %1037 = vmatpush2.bf16.msra.mxu0 0
    %1038 = vmatprep.subr.bf16.mxu0 0
    %1039 = vmatpush2.bf16.msra.mxu0 0
    %1040 = vmatprep.subr.bf16.mxu0 0
    %1041 = vmatpush2.bf16.msra.mxu0 0
    %1042 = vmatprep.subr.bf16.mxu0 0
    %1043 = vmatpush2.bf16.msra.mxu0 0
    %1044 = vmatprep.subr.bf16.mxu0 0
    %1045 = vmatpush2.bf16.msra.mxu0 0
    %1046 = vmatprep.mubr.bf16.mxu0 0
    %1047 = vmatmul.mubr.bf16.gmra.mxu0 %v948
    %v1048 = vpop.f32.mrf.mxu0
    %v1049 = vadd.f32 %v965, %v1048
    %v1050 = vpop.f32.mrf.mxu0
    %v1051 = vpop.f32.mrf.mxu0
    %v1052 = vpop.f32.mrf.mxu0
    %1053 = vdwg.mxu0
    %1054 = vst [vmem:[#allocation17] sm:$0x3] %v1049
    // Predicated region
    $region81: #{tpu_custom_call.1} parent=1 // pred_check
      _
    $region82: #{tpu_custom_call.1} parent=1 // pred_check_branch
      %1056 = sbr.rel (0) target = $region84
    $region83: #{tpu_custom_call.1} parent=1 // pred_region
      %s1058 = ssub.s32 32, 32
      %1059 = vsyncadd [#allocation5], %s1058
      %s1061 = sshll.u32 [#allocation17], 4
      %s1062 = int_to_ptr.vmem [resolvable:$true] %s1061
      %1064 = dma.vmem_to_hbm [thread:$0]  %s1062, 32, %s10, [#allocation5]
    $region84: #{tpu_custom_call.1} parent=1 // pred_fallthru
      _
    // Predicated region
    $region85: #{tpu_custom_call.1} parent=1 // pred_check
      _
    $region86: #{tpu_custom_call.1} parent=1 // pred_check_branch
      %1066 = sbr.rel (0) target = $region88
    $region87: #{tpu_custom_call.1} parent=1 // pred_region
      %1067 = dma.done [#allocation5], 32
    $region88: #{tpu_custom_call.1} parent=1 // pred_fallthru
      _
    %1068 = vsyncpa [#allocation4], 1
    %1069 = vsyncpa [#allocation7], 1
    %1070 = vsyncpa [#allocation10], 1
    %1071 = vsyncpa [#allocation13], 1
    %1072 = vsyncpa [#allocation16], 1
    %1073 = vsyncpa [#allocation5], 1

</llo_original>
